<compile_context>
chip_gen: v6e
topology: v6e:2x2x1
jax: 0.10.0
libtpu: 0.0.40
codegen_flags: <defaults>
</compile_context>

<pallas_src>
import math

import jax
import jax.numpy as jnp
from jax import lax
from jax.experimental import pallas as pl
from jax.experimental.pallas import tpu as pltpu


# ---------------------------------------------------------------------------
# Kernel
# ---------------------------------------------------------------------------
def _equiv_1to1_kernel(x_ref, w1_ref, w2t_ref, b_ref, o_ref):
    # x_ref : (tb, C, D)  native dtype
    # w1_ref: (O, C)      native dtype (fed straight to the MXU)
    # w2t_ref: (C, O)     f32, normalization scale already folded in
    # b_ref : (1, O)      f32
    # o_ref : (tb, O, D)
    x = x_ref[...]
    tb, C, _ = x_ref.shape
    O = w1_ref.shape[0]

    # (1) Main term: one batched MXU contraction over the whole batch tile
    #     (same dot_general pattern as flash-attention's P @ V).
    w1b = jnp.broadcast_to(w1_ref[...][None], (tb, O, C))             # (tb, O, C)
    main = lax.dot_general(
        w1b, x,
        dimension_numbers=(((2,), (1,)), ((0,), (0,))),
        preferred_element_type=jnp.float32)                           # (tb, O, D) f32

    # (2) Pooled-sum term: one lane reduction for the whole tile, then one
    #     (tb, C) @ (C, O) matmul with the bias fused in.
    s = jnp.sum(x, axis=-1, dtype=jnp.float32)                        # (tb, C)
    col = jnp.dot(s, w2t_ref[...],
                  preferred_element_type=jnp.float32) + b_ref[...]    # (tb, O)

    # Broadcast the pooled term across the lane (D) axis and store.
    o_ref[...] = (main + col[:, :, None]).astype(o_ref.dtype)


# ---------------------------------------------------------------------------
# Generation-aware tiling / VMEM heuristics (perf only, never correctness)
# ---------------------------------------------------------------------------
def _chip_profile():
    vmem_physical = 128 << 20          # v5e / v6e per-TensorCore VMEM
    two_tensorcores = False
    try:
        info = pltpu.get_tpu_info()
        vmem_physical = int(getattr(info, "vmem_capacity_bytes", vmem_physical))
    except Exception:
        pass
    try:
        kind = (getattr(jax.devices()[0], "device_kind", "") or "").lower()
        if "7" in kind:                # v7x-class: 2 TensorCores/chip, 64 MiB VMEM/TC
            two_tensorcores = True
            vmem_physical = min(vmem_physical, 64 << 20)
    except Exception:
        pass
    return vmem_physical, two_tensorcores


def _choose_tile(B, C, O, D, itemsize, batch_tile):
    vmem_physical, two_tc = _chip_profile()
    small_vmem = vmem_physical <= (64 << 20)          # v7x-class

    # HBM-visible bytes per batch row of a grid step (input + output block).
    row_io = (C + O) * D * itemsize
    # Approx VMEM per batch row: double-buffered in/out blocks + f32 main
    # intermediate + the per-row broadcast copy of W1 used by the batched dot.
    row_vmem = 2 * row_io + (C + O) * D * 4 + O * C * 4
    fixed_vmem = 4 * (2 * O * C + O) * 4 + (1 << 20)  # resident weights + slack

    # 96 MiB cap on 128-MiB chips (v5e/v6e), 48 MiB on 64-MiB v7x.
    cap = min(96 << 20, (vmem_physical * 3) // 4)

    if batch_tile is None:
        # Per-step byte budget instead of a hardcoded tile.
        target_io = (4 << 20) if small_vmem else (2 << 20)
        tb = max(1, target_io // max(row_io, 1))
        tb = min(tb, max(1, (cap - fixed_vmem) // max(row_vmem, 1)))
        tb = int(min(tb, B))
        # Only force >=2 grid shards when there are 2 TensorCores to feed.
        if two_tc and B > 1 and pl.cdiv(B, tb) < 2:
            tb = int(pl.cdiv(B, 2))
    else:
        tb = int(batch_tile)
    tb = max(1, min(tb, B))

    needed = tb * row_vmem + fixed_vmem               # no double-counting
    vmem_limit = int(min(max(needed, 32 << 20), cap))
    return tb, vmem_limit


# ---------------------------------------------------------------------------
# pallas_call wrapper
# ---------------------------------------------------------------------------
def _const_spec(shape, single_buffer):
    """BlockSpec for a block whose index_map never changes (resident weights)."""
    idx = lambda i: (0,) * len(shape)
    if single_buffer:
        return pl.BlockSpec(shape, idx, pipeline_mode=pl.Buffered(1))
    return pl.BlockSpec(shape, idx)


def _call(x, w1, w2t, b2, tb, vmem_limit, single_buffer_weights):
    B, C, D = x.shape
    O = w1.shape[0]
    itemsize = x.dtype.itemsize
    grid = (pl.cdiv(B, tb),)

    cost = pl.CostEstimate(
        flops=2 * B * O * C * (D + 1),
        transcendentals=0,
        bytes_accessed=B * (C + O) * D * itemsize + (2 * O * C + O) * 4,
    )

    return pl.pallas_call(
        _equiv_1to1_kernel,
        out_shape=jax.ShapeDtypeStruct((B, O, D), x.dtype),
        grid_spec=pltpu.PrefetchScalarGridSpec(
            num_scalar_prefetch=0,
            grid=grid,
            in_specs=[
                pl.BlockSpec((tb, C, D), lambda i: (i, 0, 0)),
                _const_spec((O, C), single_buffer_weights),
                _const_spec((C, O), single_buffer_weights),
                _const_spec((1, O), single_buffer_weights),
            ],
            out_specs=pl.BlockSpec((tb, O, D), lambda i: (i, 0, 0)),
        ),
        compiler_params=pltpu.CompilerParams(
            dimension_semantics=("parallel",),
            vmem_limit_bytes=vmem_limit,
        ),
        cost_estimate=cost,
    )(x, w1, w2t, b2)


_SINGLE_BUFFER_WEIGHTS_OK = None  # resolved on first call, then cached


def linear_equivariant_1to1(x, weight, bias, normalize=False, batch_tile=None):
    """x: (B, C, D); weight: (O, 2*C, 1); bias: (O,)  ->  (B, O, D)."""
    global _SINGLE_BUFFER_WEIGHTS_OK
    B, C, D = x.shape
    O = weight.shape[0]
    assert weight.shape == (O, 2 * C, 1)
    assert bias.shape == (O,)

    w = weight[..., 0]                          # (O, 2*C): conv1d with kernel size 1
    w1 = w[:, :C].astype(x.dtype)               # identity-basis weights, MXU-native dtype
    # Pooled-sum weights: kept in f32 (normalization folded in f32 for accuracy)
    # and pre-transposed so the kernel's pooled matmul is (tb,C)@(C,O) with no
    # per-step casts or transposes.
    w2t = w[:, C:].astype(jnp.float32).T        # (C, O)
    if normalize:
        w2t = w2t / D
    b2 = bias.astype(jnp.float32).reshape(1, O)

    # NOTE: for large O*C on v6e/v7x a bf16 cast of (x, w1) before the main
    # matmul (f32 accumulation kept) would raise MXU rate; left out here since
    # the layer is memory-bound at typical feature counts.
    tb, vmem_limit = _choose_tile(B, C, O, D, x.dtype.itemsize, batch_tile)

    if _SINGLE_BUFFER_WEIGHTS_OK is None:
        try:
            out = jax.block_until_ready(_call(x, w1, w2t, b2, tb, vmem_limit, True))
            _SINGLE_BUFFER_WEIGHTS_OK = True
            return out
        except Exception:
            _SINGLE_BUFFER_WEIGHTS_OK = False
    return _call(x, w1, w2t, b2, tb, vmem_limit, _SINGLE_BUFFER_WEIGHTS_OK)


# ---------------------------------------------------------------------------
# Init + reference (plain JAX) for testing
# ---------------------------------------------------------------------------
def init_params(key, in_features, out_features, dtype=jnp.float32):
    """Deterministic synthetic init matching the PyTorch shapes / bounds."""
    k_w, k_b = jax.random.split(key)
    fan_in = in_features * 2  # basis_elements == 2, kernel size 1
    bound = 1.0 / math.sqrt(fan_in)
    weight = jax.random.uniform(
        k_w, (out_features, fan_in, 1), dtype=dtype, minval=-bound, maxval=bound
    )
    bias = jax.random.uniform(
        k_b, (out_features,), dtype=dtype, minval=-bound, maxval=bound
    )
    return weight, bias


def reference(x, weight, bias, normalize=False):
    """Plain-JAX reference of the PyTorch forward."""
    B, C, D = x.shape
    s = jnp.sum(x, axis=-1, keepdims=True)
    if normalize:
        s = s / D
    basis = jnp.concatenate([x, jnp.broadcast_to(s, x.shape)], axis=1)  # (B, 2C, D)
    w = weight[..., 0]                                                  # (O, 2C)
    return jnp.einsum("oc,bcd->bod", w, basis) + bias[None, :, None]


if __name__ == "__main__":
    key = jax.random.PRNGKey(0)
    k_x, k_p, k_x2 = jax.random.split(key, 3)

    batch, in_features, out_features, dim = 2, 4, 8, 16
    x = jax.random.normal(k_x, (batch, in_features, dim), dtype=jnp.float32)
    weight, bias = init_params(k_p, in_features, out_features)

    y = jax.block_until_ready(linear_equivariant_1to1(x, weight, bias, normalize=False))
    y_ref = reference(x, weight, bias, normalize=False)
    assert y.shape == (batch, out_features, dim)
    assert jnp.allclose(y, y_ref, atol=1e-5, rtol=1e-5)

    # folded 1/D normalization path
    yn = jax.block_until_ready(linear_equivariant_1to1(x, weight, bias, normalize=True))
    yn_ref = reference(x, weight, bias, normalize=True)
    assert jnp.allclose(yn, yn_ref, atol=1e-5, rtol=1e-5)

    # non-divisible batch tile (padded tail block; padded writes must be dropped
    # and batch rows stay independent through both fused matmuls)
    x2 = jax.random.normal(k_x2, (5, in_features, dim), dtype=jnp.float32)
    y2 = jax.block_until_ready(
        linear_equivariant_1to1(x2, weight, bias, normalize=False, batch_tile=2)
    )
    y2_ref = reference(x2, weight, bias, normalize=False)
    assert jnp.allclose(y2, y2_ref, atol=1e-5, rtol=1e-5)

    print("KERNEL_OK")
</pallas_src>

<mosaic_0001>
module attributes {stable_mosaic.version = 11 : i64} {
  func.func @_equiv_1to1_kernel(%arg0: i32, %arg1: memref<2x4x16xf32, #tpu.memory_space<vmem>>, %arg2: memref<8x4xf32, #tpu.memory_space<vmem>>, %arg3: memref<4x8xf32, #tpu.memory_space<vmem>>, %arg4: memref<1x8xf32, #tpu.memory_space<vmem>>, %arg5: memref<2x8x16xf32, #tpu.memory_space<vmem>>) attributes {dimension_semantics = [#tpu.dimension_semantics<parallel>], iteration_bounds = array<i64: 1>, scalar_prefetch = 0 : i64, scratch_operands = 0 : i64, tpu.core_type = #tpu.core_type<tc>, window_params = [{transform_indices = @transform_0, window_bounds = array<i64: 2, 4, 16>}, {pipeline_mode = #tpu.pipeline_mode<synchronous>, transform_indices = @transform_1, window_bounds = array<i64: 8, 4>}, {pipeline_mode = #tpu.pipeline_mode<synchronous>, transform_indices = @transform_2, window_bounds = array<i64: 4, 8>}, {pipeline_mode = #tpu.pipeline_mode<synchronous>, transform_indices = @transform_3, window_bounds = array<i64: 1, 8>}, {transform_indices = @transform_4, window_bounds = array<i64: 2, 8, 16>}]} {
    %c0 = arith.constant 0 : index
    %c0_0 = arith.constant 0 : index
    %c0_1 = arith.constant 0 : index
    %0 = vector.load %arg1[%c0, %c0_0, %c0_1] : memref<2x4x16xf32, #tpu.memory_space<vmem>>, vector<2x4x16xf32>
    %c0_2 = arith.constant 0 : index
    %c0_3 = arith.constant 0 : index
    %1 = vector.load %arg2[%c0_2, %c0_3] : memref<8x4xf32, #tpu.memory_space<vmem>>, vector<8x4xf32>
    %2 = vector.shape_cast %1 : vector<8x4xf32> to vector<1x8x4xf32>
    %3 = vector.shape_cast %2 : vector<1x8x4xf32> to vector<1x8x4xf32>
    %4 = vector.broadcast %3 : vector<1x8x4xf32> to vector<2x8x4xf32>
    %cst = arith.constant dense<0.000000e+00> : vector<2x8x16xf32>
    %5 = tpu.matmul %4, %0, %cst {dimension_numbers = #tpu.dot_dimension_numbers<[2], [1], [1], [2], [0, 0, 0, 1, 1, 2], [0], [0]>} : vector<2x8x4xf32>, vector<2x4x16xf32>, vector<2x8x16xf32> -> vector<2x8x16xf32>
    %cst_4 = arith.constant dense<0.000000e+00> : vector<2x4xf32>
    %6 = vector.multi_reduction <add>, %0, %cst_4 [2] : vector<2x4x16xf32> to vector<2x4xf32>
    %c0_5 = arith.constant 0 : index
    %c0_6 = arith.constant 0 : index
    %7 = vector.load %arg3[%c0_5, %c0_6] : memref<4x8xf32, #tpu.memory_space<vmem>>, vector<4x8xf32>
    %cst_7 = arith.constant dense<0.000000e+00> : vector<2x8xf32>
    %8 = tpu.matmul %6, %7, %cst_7 {dimension_numbers = #tpu.dot_dimension_numbers<[1], [0], [0], [1], [0, 0, 1, 1], [], []>} : vector<2x4xf32>, vector<4x8xf32>, vector<2x8xf32> -> vector<2x8xf32>
    %c0_8 = arith.constant 0 : index
    %c0_9 = arith.constant 0 : index
    %9 = vector.load %arg4[%c0_8, %c0_9] : memref<1x8xf32, #tpu.memory_space<vmem>>, vector<1x8xf32>
    %10 = vector.broadcast %9 : vector<1x8xf32> to vector<2x8xf32>
    %11 = arith.addf %8, %10 : vector<2x8xf32>
    %12 = vector.shape_cast %11 : vector<2x8xf32> to vector<2x8x1xf32>
    %13 = vector.broadcast %12 : vector<2x8x1xf32> to vector<2x8x16xf32>
    %14 = arith.addf %5, %13 : vector<2x8x16xf32>
    %c0_10 = arith.constant 0 : index
    %c0_11 = arith.constant 0 : index
    %c0_12 = arith.constant 0 : index
    %15 = vector.load %arg5[%c0_10, %c0_11, %c0_12] : memref<2x8x16xf32, #tpu.memory_space<vmem>>, vector<2x8x16xf32>
    tpu.vector_store %arg5[%c0_10, %c0_11, %c0_12], %14 {strides = array<i32>} : memref<2x8x16xf32, #tpu.memory_space<vmem>>, vector<2x8x16xf32>,
    return
  }
  func.func @transform_0(%arg0: i32) -> (i32, i32, i32) {
    %c0_i32 = arith.constant 0 : i32
    %c0_i32_0 = arith.constant 0 : i32
    %c0_i32_1 = arith.constant 0 : i32
    return %arg0, %c0_i32, %c0_i32_0 : i32, i32, i32
  }
  func.func @transform_1(%arg0: i32) -> (i32, i32) {
    %c0_i32 = arith.constant 0 : i32
    %c0_i32_0 = arith.constant 0 : i32
    %c0_i32_1 = arith.constant 0 : i32
    return %c0_i32, %c0_i32_0 : i32, i32
  }
  func.func @transform_2(%arg0: i32) -> (i32, i32) {
    %c0_i32 = arith.constant 0 : i32
    %c0_i32_0 = arith.constant 0 : i32
    %c0_i32_1 = arith.constant 0 : i32
    return %c0_i32, %c0_i32_0 : i32, i32
  }
  func.func @transform_3(%arg0: i32) -> (i32, i32) {
    %c0_i32 = arith.constant 0 : i32
    %c0_i32_0 = arith.constant 0 : i32
    %c0_i32_1 = arith.constant 0 : i32
    return %c0_i32, %c0_i32_0 : i32, i32
  }
  func.func @transform_4(%arg0: i32) -> (i32, i32, i32) {
    %c0_i32 = arith.constant 0 : i32
    %c0_i32_0 = arith.constant 0 : i32
    %c0_i32_1 = arith.constant 0 : i32
    return %arg0, %c0_i32, %c0_i32_0 : i32, i32, i32
  }
}

module attributes {stable_mosaic.version = 11 : i64} {
  func.func @_equiv_1to1_kernel(%arg0: i32, %arg1: memref<2x4x16xf32, #tpu.memory_space<vmem>>, %arg2: memref<8x4xf32, #tpu.memory_space<vmem>>, %arg3: memref<4x8xf32, #tpu.memory_space<vmem>>, %arg4: memref<1x8xf32, #tpu.memory_space<vmem>>, %arg5: memref<2x8x16xf32, #tpu.memory_space<vmem>>) attributes {dimension_semantics = [#tpu.dimension_semantics<parallel>], iteration_bounds = array<i64: 1>, scalar_prefetch = 0 : i64, scratch_operands = 0 : i64, tpu.core_type = #tpu.core_type<tc>, window_params = [{transform_indices = @transform_0, window_bounds = array<i64: 2, 4, 16>}, {pipeline_mode = #tpu.pipeline_mode<synchronous>, transform_indices = @transform_1, window_bounds = array<i64: 8, 4>}, {pipeline_mode = #tpu.pipeline_mode<synchronous>, transform_indices = @transform_2, window_bounds = array<i64: 4, 8>}, {pipeline_mode = #tpu.pipeline_mode<synchronous>, transform_indices = @transform_3, window_bounds = array<i64: 1, 8>}, {transform_indices = @transform_4, window_bounds = array<i64: 2, 8, 16>}]} {
    %c0 = arith.constant 0 : index
    %c0_0 = arith.constant 0 : index
    %c0_1 = arith.constant 0 : index
    %0 = vector.load %arg1[%c0, %c0_0, %c0_1] : memref<2x4x16xf32, #tpu.memory_space<vmem>>, vector<2x4x16xf32>
    %c0_2 = arith.constant 0 : index
    %c0_3 = arith.constant 0 : index
    %1 = vector.load %arg2[%c0_2, %c0_3] : memref<8x4xf32, #tpu.memory_space<vmem>>, vector<8x4xf32>
    %2 = vector.shape_cast %1 : vector<8x4xf32> to vector<1x8x4xf32>
    %3 = vector.shape_cast %2 : vector<1x8x4xf32> to vector<1x8x4xf32>
    %4 = vector.broadcast %3 : vector<1x8x4xf32> to vector<2x8x4xf32>
    %cst = arith.constant dense<0.000000e+00> : vector<2x8x16xf32>
    %5 = tpu.matmul %4, %0, %cst {dimension_numbers = #tpu.dot_dimension_numbers<[2], [1], [1], [2], [0, 0, 0, 1, 1, 2], [0], [0]>} : vector<2x8x4xf32>, vector<2x4x16xf32>, vector<2x8x16xf32> -> vector<2x8x16xf32>
    %cst_4 = arith.constant dense<0.000000e+00> : vector<2x4xf32>
    %6 = vector.multi_reduction <add>, %0, %cst_4 [2] : vector<2x4x16xf32> to vector<2x4xf32>
    %c0_5 = arith.constant 0 : index
    %c0_6 = arith.constant 0 : index
    %7 = vector.load %arg3[%c0_5, %c0_6] : memref<4x8xf32, #tpu.memory_space<vmem>>, vector<4x8xf32>
    %cst_7 = arith.constant dense<0.000000e+00> : vector<2x8xf32>
    %8 = tpu.matmul %6, %7, %cst_7 {dimension_numbers = #tpu.dot_dimension_numbers<[1], [0], [0], [1], [0, 0, 1, 1], [], []>} : vector<2x4xf32>, vector<4x8xf32>, vector<2x8xf32> -> vector<2x8xf32>
    %c0_8 = arith.constant 0 : index
    %c0_9 = arith.constant 0 : index
    %9 = vector.load %arg4[%c0_8, %c0_9] : memref<1x8xf32, #tpu.memory_space<vmem>>, vector<1x8xf32>
    %10 = vector.broadcast %9 : vector<1x8xf32> to vector<2x8xf32>
    %11 = arith.addf %8, %10 : vector<2x8xf32>
    %12 = vector.shape_cast %11 : vector<2x8xf32> to vector<2x8x1xf32>
    %13 = vector.broadcast %12 : vector<2x8x1xf32> to vector<2x8x16xf32>
    %14 = arith.addf %5, %13 : vector<2x8x16xf32>
    %c0_10 = arith.constant 0 : index
    %c0_11 = arith.constant 0 : index
    %c0_12 = arith.constant 0 : index
    %15 = vector.load %arg5[%c0_10, %c0_11, %c0_12] : memref<2x8x16xf32, #tpu.memory_space<vmem>>, vector<2x8x16xf32>
    tpu.vector_store %arg5[%c0_10, %c0_11, %c0_12], %14 {strides = array<i32>} : memref<2x8x16xf32, #tpu.memory_space<vmem>>, vector<2x8x16xf32>,
    return
  }
  func.func @transform_0(%arg0: i32) -> (i32, i32, i32) {
    %c0_i32 = arith.constant 0 : i32
    %c0_i32_0 = arith.constant 0 : i32
    %c0_i32_1 = arith.constant 0 : i32
    return %arg0, %c0_i32, %c0_i32_0 : i32, i32, i32
  }
  func.func @transform_1(%arg0: i32) -> (i32, i32) {
    %c0_i32 = arith.constant 0 : i32
    %c0_i32_0 = arith.constant 0 : i32
    %c0_i32_1 = arith.constant 0 : i32
    return %c0_i32, %c0_i32_0 : i32, i32
  }
  func.func @transform_2(%arg0: i32) -> (i32, i32) {
    %c0_i32 = arith.constant 0 : i32
    %c0_i32_0 = arith.constant 0 : i32
    %c0_i32_1 = arith.constant 0 : i32
    return %c0_i32, %c0_i32_0 : i32, i32
  }
  func.func @transform_3(%arg0: i32) -> (i32, i32) {
    %c0_i32 = arith.constant 0 : i32
    %c0_i32_0 = arith.constant 0 : i32
    %c0_i32_1 = arith.constant 0 : i32
    return %c0_i32, %c0_i32_0 : i32, i32
  }
  func.func @transform_4(%arg0: i32) -> (i32, i32, i32) {
    %c0_i32 = arith.constant 0 : i32
    %c0_i32_0 = arith.constant 0 : i32
    %c0_i32_1 = arith.constant 0 : i32
    return %arg0, %c0_i32, %c0_i32_0 : i32, i32, i32
  }
}

</mosaic_0001>

<llo_original>
// kernel: tpu_custom_call.1
$region0: #{tpu_custom_call.1}
  #allocation0 [shape = 'u32[]', space=smem, size = 0x4, offset = 0x4, fixed_abs, tag = 'smem constant byte address 0x4 - core index']
  #allocation1 [shape = 'u32[144,128]{1,0:T(1,128)}', space=vmem, size = 0x12000, scoped, tag = 'internal scratch']
  %s0 = inlined_call_operand.vmem [shape: f32[2,4,16], index: 0, kind: input, shape index: {}]
  %s1 = inlined_call_operand.vmem [shape: f32[8,4], index: 1, kind: input, shape index: {}]
  %s2 = inlined_call_operand.vmem [shape: f32[4,8], index: 2, kind: input, shape index: {}]
  %s3 = inlined_call_operand.vmem [shape: f32[1,8], index: 3, kind: input, shape index: {}]
  %s4 = inlined_call_operand.hbm [shape: f32[2,8,16], index: 4, kind: output, shape index: {}]
  %s5 = sld [smem:[#allocation0]]
  $region26: #{tpu_custom_call.1} parent=0
    _
  %s7 = ssub.s32 1, %s5
  %s8 = scalar_select 0, %s7, %s5
  $region1: #{tpu_custom_call.1} parent=0
    #allocation2 [shape = 'u8[8192]{0}', space=vmem, size = 0x2000, scoped, tag = 'output window, operand 0, single buffered']
    #allocation3 [shape = 's32[1]{0}', space=sflag, size = 0x4, scoped, tag = 'scoped memory for tpu_custom_call.1']
    %9 = vsyncpa [#allocation3], 0
    // Predicated region
    $region2: #{tpu_custom_call.1} parent=1 // pred_check
      _
    $region3: #{tpu_custom_call.1} parent=1 // pred_check_branch
      %11 = sbr.rel (0) target = $region5
    $region4: #{tpu_custom_call.1} parent=1 // pred_region
      _
    $region5: #{tpu_custom_call.1} parent=1 // pred_fallthru
      _
    // Predicated region
    $region6: #{tpu_custom_call.1} parent=1 // pred_check
      _
    $region7: #{tpu_custom_call.1} parent=1 // pred_check_branch
      %13 = sbr.rel (0) target = $region9
    $region8: #{tpu_custom_call.1} parent=1 // pred_region
      _
    $region9: #{tpu_custom_call.1} parent=1 // pred_fallthru
      _
    // Predicated region
    $region10: #{tpu_custom_call.1} parent=1 // pred_check
      _
    $region11: #{tpu_custom_call.1} parent=1 // pred_check_branch
      %15 = sbr.rel (0) target = $region13
    $region12: #{tpu_custom_call.1} parent=1 // pred_region
      _
    $region13: #{tpu_custom_call.1} parent=1 // pred_fallthru
      _
    // Predicated region
    $region14: #{tpu_custom_call.1} parent=1 // pred_check
      _
    $region15: #{tpu_custom_call.1} parent=1 // pred_check_branch
      %17 = sbr.rel (0) target = $region17
    $region16: #{tpu_custom_call.1} parent=1 // pred_region
      _
    $region17: #{tpu_custom_call.1} parent=1 // pred_fallthru
      _
    %v18 = vld [vmem:[%s0] sm:$0xf]
    %v19 = vld [vmem:[%s0 + $0x4] sm:$0xf]
    %v20 = vld [vmem:[%s1] sm:$0xff]
    %vm21 = vcmask 125952
    %v22 = vsel %vm21, %v18, 0.0
    %23 = vadd.xlane.f32.xlu0 %v22
    %v24 = vpop.xlane.xlu0 %23
    %v25 = vsel %vm21, %v19, 0.0
    %26 = vadd.xlane.f32.xlu0 %v25
    %v27 = vpop.xlane.xlu0 %26
    %v28 = vld [vmem:[%s2] sm:$0xf]
    %v29 = vld [vmem:[%s3] sm:$0x1]
    %v31 = vlaneseq
    %v32 = vshrl.u32 %v31, 7
    %v33 = vsub.s32 0, %v32
    %v34 = vrot.slane %v29, %v33
    %v38 = vlaneseq
    %v39 = vand.u32 %v38, 127
    %v40 = vlaneseq
    %v41 = vshrl.u32 %v40, 7
    %v42 = vsub.s32 %v39, %v41
    %v43 = vrot.slane %v24, %v42
    %v44 = vlaneseq
    %v45 = vshrl.u32 %v44, 7
    %v46 = vsub.s32 %v39, %v45
    %v47 = vrot.slane %v27, %v46
    %vm48 = vcmask 1041409
    %v49 = vsel %vm48, %v47, %v43
    %vm50 = vcmask 31744
    %v51 = vsel %vm50, %v49, 0
    %vm53 = vcmask 1043456
    %v55 = vsel %vm53, %v28, 0
    %57 = vmatprep.subr.mxu0 0.0
    %58 = vmatpush1.msra.mxu0 0.0
    %59 = vmatprep.subr.mxu0 0.0
    %60 = vmatpush1.msra.mxu0 0.0
    %61 = vmatprep.subr.mxu0 0.0
    %62 = vmatpush1.msra.mxu0 0.0
    %63 = vmatprep.subr.mxu0 0.0
    %64 = vmatpush1.msra.mxu0 0.0
    %65 = vmatprep.subr.mxu0 0.0
    %66 = vmatpush1.msra.mxu0 0.0
    %67 = vmatprep.subr.mxu0 0.0
    %68 = vmatpush1.msra.mxu0 0.0
    %69 = vmatprep.subr.mxu0 0.0
    %70 = vmatpush1.msra.mxu0 0.0
    %71 = vmatprep.subr.mxu0 0.0
    %72 = vmatpush1.msra.mxu0 0.0
    %73 = vmatprep.subr.mxu0 0.0
    %74 = vmatpush1.msra.mxu0 0.0
    %75 = vmatprep.subr.mxu0 0.0
    %76 = vmatpush1.msra.mxu0 0.0
    %77 = vmatprep.subr.mxu0 0.0
    %78 = vmatpush1.msra.mxu0 0.0
    %79 = vmatprep.subr.mxu0 0.0
    %80 = vmatpush1.msra.mxu0 0.0
    %81 = vmatprep.subr.mxu0 0.0
    %82 = vmatpush1.msra.mxu0 0.0
    %83 = vmatprep.subr.mxu0 0.0
    %84 = vmatpush1.msra.mxu0 0.0
    %85 = vmatprep.subr.mxu0 0.0
    %86 = vmatpush1.msra.mxu0 0.0
    %87 = vmatprep.subr.mxu0 0.0
    %88 = vmatpush1.msra.mxu0 %v55
    %89 = vmatprep.subr.mxu0 0.0
    %90 = vmatpush2.msra.mxu0 0.0
    %91 = vmatprep.subr.mxu0 0.0
    %92 = vmatpush2.msra.mxu0 0.0
    %93 = vmatprep.subr.mxu0 0.0
    %94 = vmatpush2.msra.mxu0 0.0
    %95 = vmatprep.subr.mxu0 0.0
    %96 = vmatpush2.msra.mxu0 0.0
    %97 = vmatprep.subr.mxu0 0.0
    %98 = vmatpush2.msra.mxu0 0.0
    %99 = vmatprep.subr.mxu0 0.0
    %100 = vmatpush2.msra.mxu0 0.0
    %101 = vmatprep.subr.mxu0 0.0
    %102 = vmatpush2.msra.mxu0 0.0
    %103 = vmatprep.subr.mxu0 0.0
    %104 = vmatpush2.msra.mxu0 0.0
    %105 = vmatprep.subr.mxu0 0.0
    %106 = vmatpush2.msra.mxu0 0.0
    %107 = vmatprep.subr.mxu0 0.0
    %108 = vmatpush2.msra.mxu0 0.0
    %109 = vmatprep.subr.mxu0 0.0
    %110 = vmatpush2.msra.mxu0 0.0
    %111 = vmatprep.subr.mxu0 0.0
    %112 = vmatpush2.msra.mxu0 0.0
    %113 = vmatprep.subr.mxu0 0.0
    %114 = vmatpush2.msra.mxu0 0.0
    %115 = vmatprep.subr.mxu0 0.0
    %116 = vmatpush2.msra.mxu0 0.0
    %117 = vmatprep.subr.mxu0 0.0
    %118 = vmatpush2.msra.mxu0 0.0
    %119 = vmatprep.subr.mxu0 0.0
    %120 = vmatpush2.msra.mxu0 0.0
    %121 = vmatprep.mubr.f32.mxu0 0.0
    %122 = vmatmul.mubr.f32.gmra.mxu0 %v51
    %v123 = vpop.f32.mrf.mxu0
    %v124 = vadd.f32 %v34, %v123
    %v125 = vpop.f32.mrf.mxu0
    %126 = vdwg.mxu0
    %v127 = vlaneseq
    %v128 = vshrl.u32 %v127, 7
    %v129 = vsub.s32 0, %v128
    %v130 = vrot.slane %v124, %v129
    %132 = vbcast.lane.b32.xlu0 %v130, 256
    %v133 = vpop.permute.xlu0 %132
    %v134 = vlaneseq
    %v135 = vshrl.u32 %v134, 7
    %v136 = vsub.s32 1, %v135
    %v137 = vrot.slane %v124, %v136
    %139 = vbcast.lane.b32.xlu0 %v137, 256
    %v140 = vpop.permute.xlu0 %139
    %v142 = vsel %vm50, %v20, 0
    %v145 = vsel %vm53, %v18, 0
    %147 = vmatprep.subr.mxu0 0.0
    %148 = vmatpush1.msra.mxu0 0.0
    %149 = vmatprep.subr.mxu0 0.0
    %150 = vmatpush1.msra.mxu0 0.0
    %151 = vmatprep.subr.mxu0 0.0
    %152 = vmatpush1.msra.mxu0 0.0
    %153 = vmatprep.subr.mxu0 0.0
    %154 = vmatpush1.msra.mxu0 0.0
    %155 = vmatprep.subr.mxu0 0.0
    %156 = vmatpush1.msra.mxu0 0.0
    %157 = vmatprep.subr.mxu0 0.0
    %158 = vmatpush1.msra.mxu0 0.0
    %159 = vmatprep.subr.mxu0 0.0
    %160 = vmatpush1.msra.mxu0 0.0
    %161 = vmatprep.subr.mxu0 0.0
    %162 = vmatpush1.msra.mxu0 0.0
    %163 = vmatprep.subr.mxu0 0.0
    %164 = vmatpush1.msra.mxu0 0.0
    %165 = vmatprep.subr.mxu0 0.0
    %166 = vmatpush1.msra.mxu0 0.0
    %167 = vmatprep.subr.mxu0 0.0
    %168 = vmatpush1.msra.mxu0 0.0
    %169 = vmatprep.subr.mxu0 0.0
    %170 = vmatpush1.msra.mxu0 0.0
    %171 = vmatprep.subr.mxu0 0.0
    %172 = vmatpush1.msra.mxu0 0.0
    %173 = vmatprep.subr.mxu0 0.0
    %174 = vmatpush1.msra.mxu0 0.0
    %175 = vmatprep.subr.mxu0 0.0
    %176 = vmatpush1.msra.mxu0 0.0
    %177 = vmatprep.subr.mxu0 0.0
    %178 = vmatpush1.msra.mxu0 %v145
    %179 = vmatprep.subr.mxu0 0.0
    %180 = vmatpush2.msra.mxu0 0.0
    %181 = vmatprep.subr.mxu0 0.0
    %182 = vmatpush2.msra.mxu0 0.0
    %183 = vmatprep.subr.mxu0 0.0
    %184 = vmatpush2.msra.mxu0 0.0
    %185 = vmatprep.subr.mxu0 0.0
    %186 = vmatpush2.msra.mxu0 0.0
    %187 = vmatprep.subr.mxu0 0.0
    %188 = vmatpush2.msra.mxu0 0.0
    %189 = vmatprep.subr.mxu0 0.0
    %190 = vmatpush2.msra.mxu0 0.0
    %191 = vmatprep.subr.mxu0 0.0
    %192 = vmatpush2.msra.mxu0 0.0
    %193 = vmatprep.subr.mxu0 0.0
    %194 = vmatpush2.msra.mxu0 0.0
    %195 = vmatprep.subr.mxu0 0.0
    %196 = vmatpush2.msra.mxu0 0.0
    %197 = vmatprep.subr.mxu0 0.0
    %198 = vmatpush2.msra.mxu0 0.0
    %199 = vmatprep.subr.mxu0 0.0
    %200 = vmatpush2.msra.mxu0 0.0
    %201 = vmatprep.subr.mxu0 0.0
    %202 = vmatpush2.msra.mxu0 0.0
    %203 = vmatprep.subr.mxu0 0.0
    %204 = vmatpush2.msra.mxu0 0.0
    %205 = vmatprep.subr.mxu0 0.0
    %206 = vmatpush2.msra.mxu0 0.0
    %207 = vmatprep.subr.mxu0 0.0
    %208 = vmatpush2.msra.mxu0 0.0
    %209 = vmatprep.subr.mxu0 0.0
    %210 = vmatpush2.msra.mxu0 0.0
    %211 = vmatprep.mubr.f32.mxu0 0.0
    %212 = vmatmul.mubr.f32.gmra.mxu0 %v142
    %v213 = vpop.f32.mrf.mxu0
    %v214 = vadd.f32 %v133, %v213
    %v215 = vpop.f32.mrf.mxu0
    %216 = vdwg.mxu0
    %v218 = vsel %vm53, %v19, 0
    %220 = vmatprep.subr.mxu0 0.0
    %221 = vmatpush1.msra.mxu0 0.0
    %222 = vmatprep.subr.mxu0 0.0
    %223 = vmatpush1.msra.mxu0 0.0
    %224 = vmatprep.subr.mxu0 0.0
    %225 = vmatpush1.msra.mxu0 0.0
    %226 = vmatprep.subr.mxu0 0.0
    %227 = vmatpush1.msra.mxu0 0.0
    %228 = vmatprep.subr.mxu0 0.0
    %229 = vmatpush1.msra.mxu0 0.0
    %230 = vmatprep.subr.mxu0 0.0
    %231 = vmatpush1.msra.mxu0 0.0
    %232 = vmatprep.subr.mxu0 0.0
    %233 = vmatpush1.msra.mxu0 0.0
    %234 = vmatprep.subr.mxu0 0.0
    %235 = vmatpush1.msra.mxu0 0.0
    %236 = vmatprep.subr.mxu0 0.0
    %237 = vmatpush1.msra.mxu0 0.0
    %238 = vmatprep.subr.mxu0 0.0
    %239 = vmatpush1.msra.mxu0 0.0
    %240 = vmatprep.subr.mxu0 0.0
    %241 = vmatpush1.msra.mxu0 0.0
    %242 = vmatprep.subr.mxu0 0.0
    %243 = vmatpush1.msra.mxu0 0.0
    %244 = vmatprep.subr.mxu0 0.0
    %245 = vmatpush1.msra.mxu0 0.0
    %246 = vmatprep.subr.mxu0 0.0
    %247 = vmatpush1.msra.mxu0 0.0
    %248 = vmatprep.subr.mxu0 0.0
    %249 = vmatpush1.msra.mxu0 0.0
    %250 = vmatprep.subr.mxu0 0.0
    %251 = vmatpush1.msra.mxu0 %v218
    %252 = vmatprep.subr.mxu0 0.0
    %253 = vmatpush2.msra.mxu0 0.0
    %254 = vmatprep.subr.mxu0 0.0
    %255 = vmatpush2.msra.mxu0 0.0
    %256 = vmatprep.subr.mxu0 0.0
    %257 = vmatpush2.msra.mxu0 0.0
    %258 = vmatprep.subr.mxu0 0.0
    %259 = vmatpush2.msra.mxu0 0.0
    %260 = vmatprep.subr.mxu0 0.0
    %261 = vmatpush2.msra.mxu0 0.0
    %262 = vmatprep.subr.mxu0 0.0
    %263 = vmatpush2.msra.mxu0 0.0
    %264 = vmatprep.subr.mxu0 0.0
    %265 = vmatpush2.msra.mxu0 0.0
    %266 = vmatprep.subr.mxu0 0.0
    %267 = vmatpush2.msra.mxu0 0.0
    %268 = vmatprep.subr.mxu0 0.0
    %269 = vmatpush2.msra.mxu0 0.0
    %270 = vmatprep.subr.mxu0 0.0
    %271 = vmatpush2.msra.mxu0 0.0
    %272 = vmatprep.subr.mxu0 0.0
    %273 = vmatpush2.msra.mxu0 0.0
    %274 = vmatprep.subr.mxu0 0.0
    %275 = vmatpush2.msra.mxu0 0.0
    %276 = vmatprep.subr.mxu0 0.0
    %277 = vmatpush2.msra.mxu0 0.0
    %278 = vmatprep.subr.mxu0 0.0
    %279 = vmatpush2.msra.mxu0 0.0
    %280 = vmatprep.subr.mxu0 0.0
    %281 = vmatpush2.msra.mxu0 0.0
    %282 = vmatprep.subr.mxu0 0.0
    %283 = vmatpush2.msra.mxu0 0.0
    %284 = vmatprep.mubr.f32.mxu0 0.0
    %285 = vmatmul.mubr.f32.gmra.mxu0 %v142
    %v286 = vpop.f32.mrf.mxu0
    %v287 = vadd.f32 %v140, %v286
    %v288 = vpop.f32.mrf.mxu0
    %289 = vdwg.mxu0
    %vm290 = vcmask 130048
    %291 = vst.msk [vmem:[#allocation2] sm:$0xff] %vm290, %v214
    %292 = vst.msk [vmem:[#allocation2 + $0x8] sm:$0xff] %vm290, %v287
    // Predicated region
    $region18: #{tpu_custom_call.1} parent=1 // pred_check
      _
    $region19: #{tpu_custom_call.1} parent=1 // pred_check_branch
      %294 = sbr.rel (0) target = $region21
    $region20: #{tpu_custom_call.1} parent=1 // pred_region
      %s296 = ssub.s32 256, 256
      %297 = vsyncadd [#allocation3], %s296
      %s298 = sshll.u32 [#allocation2], 4
      %s299 = int_to_ptr.vmem [resolvable:$true] %s298
      %304 = dma.vmem_to_hbm [thread:$0]  %s299, 256, %s4, [#allocation3], 128, 128, 8
    $region21: #{tpu_custom_call.1} parent=1 // pred_fallthru
      _
    // Predicated region
    $region22: #{tpu_custom_call.1} parent=1 // pred_check
      _
    $region23: #{tpu_custom_call.1} parent=1 // pred_check_branch
      %306 = sbr.rel (0) target = $region25
    $region24: #{tpu_custom_call.1} parent=1 // pred_region
      %307 = dma.done [#allocation3], 256
    $region25: #{tpu_custom_call.1} parent=1 // pred_fallthru
      _
    %308 = vsyncpa [#allocation3], 1

// kernel: tpu_custom_call.1
$region0: #{tpu_custom_call.1}
  #allocation0 [shape = 'u32[]', space=smem, size = 0x4, offset = 0x4, fixed_abs, tag = 'smem constant byte address 0x4 - core index']
  #allocation1 [shape = 'u32[144,128]{1,0:T(1,128)}', space=vmem, size = 0x12000, scoped, tag = 'internal scratch']
  %s0 = inlined_call_operand.vmem [shape: f32[2,4,16], index: 0, kind: input, shape index: {}]
  %s1 = inlined_call_operand.vmem [shape: f32[8,4], index: 1, kind: input, shape index: {}]
  %s2 = inlined_call_operand.vmem [shape: f32[4,8], index: 2, kind: input, shape index: {}]
  %s3 = inlined_call_operand.vmem [shape: f32[1,8], index: 3, kind: input, shape index: {}]
  %s4 = inlined_call_operand.hbm [shape: f32[2,8,16], index: 4, kind: output, shape index: {}]
  %s5 = sld [smem:[#allocation0]]
  $region26: #{tpu_custom_call.1} parent=0
    _
  %s7 = ssub.s32 1, %s5
  %s8 = scalar_select 0, %s7, %s5
  $region1: #{tpu_custom_call.1} parent=0
    #allocation2 [shape = 'u8[8192]{0}', space=vmem, size = 0x2000, scoped, tag = 'output window, operand 0, single buffered']
    #allocation3 [shape = 's32[1]{0}', space=sflag, size = 0x4, scoped, tag = 'scoped memory for tpu_custom_call.1']
    %9 = vsyncpa [#allocation3], 0
    // Predicated region
    $region2: #{tpu_custom_call.1} parent=1 // pred_check
      _
    $region3: #{tpu_custom_call.1} parent=1 // pred_check_branch
      %11 = sbr.rel (0) target = $region5
    $region4: #{tpu_custom_call.1} parent=1 // pred_region
      _
    $region5: #{tpu_custom_call.1} parent=1 // pred_fallthru
      _
    // Predicated region
    $region6: #{tpu_custom_call.1} parent=1 // pred_check
      _
    $region7: #{tpu_custom_call.1} parent=1 // pred_check_branch
      %13 = sbr.rel (0) target = $region9
    $region8: #{tpu_custom_call.1} parent=1 // pred_region
      _
    $region9: #{tpu_custom_call.1} parent=1 // pred_fallthru
      _
    // Predicated region
    $region10: #{tpu_custom_call.1} parent=1 // pred_check
      _
    $region11: #{tpu_custom_call.1} parent=1 // pred_check_branch
      %15 = sbr.rel (0) target = $region13
    $region12: #{tpu_custom_call.1} parent=1 // pred_region
      _
    $region13: #{tpu_custom_call.1} parent=1 // pred_fallthru
      _
    // Predicated region
    $region14: #{tpu_custom_call.1} parent=1 // pred_check
      _
    $region15: #{tpu_custom_call.1} parent=1 // pred_check_branch
      %17 = sbr.rel (0) target = $region17
    $region16: #{tpu_custom_call.1} parent=1 // pred_region
      _
    $region17: #{tpu_custom_call.1} parent=1 // pred_fallthru
      _
    %v18 = vld [vmem:[%s0] sm:$0xf]
    %v19 = vld [vmem:[%s0 + $0x4] sm:$0xf]
    %v20 = vld [vmem:[%s1] sm:$0xff]
    %vm21 = vcmask 125952
    %v22 = vsel %vm21, %v18, 0.0
    %23 = vadd.xlane.f32.xlu0 %v22
    %v24 = vpop.xlane.xlu0 %23
    %v25 = vsel %vm21, %v19, 0.0
    %26 = vadd.xlane.f32.xlu0 %v25
    %v27 = vpop.xlane.xlu0 %26
    %v28 = vld [vmem:[%s2] sm:$0xf]
    %v29 = vld [vmem:[%s3] sm:$0x1]
    %v31 = vlaneseq
    %v32 = vshrl.u32 %v31, 7
    %v33 = vsub.s32 0, %v32
    %v34 = vrot.slane %v29, %v33
    %v38 = vlaneseq
    %v39 = vand.u32 %v38, 127
    %v40 = vlaneseq
    %v41 = vshrl.u32 %v40, 7
    %v42 = vsub.s32 %v39, %v41
    %v43 = vrot.slane %v24, %v42
    %v44 = vlaneseq
    %v45 = vshrl.u32 %v44, 7
    %v46 = vsub.s32 %v39, %v45
    %v47 = vrot.slane %v27, %v46
    %vm48 = vcmask 1041409
    %v49 = vsel %vm48, %v47, %v43
    %vm50 = vcmask 31744
    %v51 = vsel %vm50, %v49, 0
    %vm53 = vcmask 1043456
    %v55 = vsel %vm53, %v28, 0
    %57 = vmatprep.subr.mxu0 0.0
    %58 = vmatpush1.msra.mxu0 0.0
    %59 = vmatprep.subr.mxu0 0.0
    %60 = vmatpush1.msra.mxu0 0.0
    %61 = vmatprep.subr.mxu0 0.0
    %62 = vmatpush1.msra.mxu0 0.0
    %63 = vmatprep.subr.mxu0 0.0
    %64 = vmatpush1.msra.mxu0 0.0
    %65 = vmatprep.subr.mxu0 0.0
    %66 = vmatpush1.msra.mxu0 0.0
    %67 = vmatprep.subr.mxu0 0.0
    %68 = vmatpush1.msra.mxu0 0.0
    %69 = vmatprep.subr.mxu0 0.0
    %70 = vmatpush1.msra.mxu0 0.0
    %71 = vmatprep.subr.mxu0 0.0
    %72 = vmatpush1.msra.mxu0 0.0
    %73 = vmatprep.subr.mxu0 0.0
    %74 = vmatpush1.msra.mxu0 0.0
    %75 = vmatprep.subr.mxu0 0.0
    %76 = vmatpush1.msra.mxu0 0.0
    %77 = vmatprep.subr.mxu0 0.0
    %78 = vmatpush1.msra.mxu0 0.0
    %79 = vmatprep.subr.mxu0 0.0
    %80 = vmatpush1.msra.mxu0 0.0
    %81 = vmatprep.subr.mxu0 0.0
    %82 = vmatpush1.msra.mxu0 0.0
    %83 = vmatprep.subr.mxu0 0.0
    %84 = vmatpush1.msra.mxu0 0.0
    %85 = vmatprep.subr.mxu0 0.0
    %86 = vmatpush1.msra.mxu0 0.0
    %87 = vmatprep.subr.mxu0 0.0
    %88 = vmatpush1.msra.mxu0 %v55
    %89 = vmatprep.subr.mxu0 0.0
    %90 = vmatpush2.msra.mxu0 0.0
    %91 = vmatprep.subr.mxu0 0.0
    %92 = vmatpush2.msra.mxu0 0.0
    %93 = vmatprep.subr.mxu0 0.0
    %94 = vmatpush2.msra.mxu0 0.0
    %95 = vmatprep.subr.mxu0 0.0
    %96 = vmatpush2.msra.mxu0 0.0
    %97 = vmatprep.subr.mxu0 0.0
    %98 = vmatpush2.msra.mxu0 0.0
    %99 = vmatprep.subr.mxu0 0.0
    %100 = vmatpush2.msra.mxu0 0.0
    %101 = vmatprep.subr.mxu0 0.0
    %102 = vmatpush2.msra.mxu0 0.0
    %103 = vmatprep.subr.mxu0 0.0
    %104 = vmatpush2.msra.mxu0 0.0
    %105 = vmatprep.subr.mxu0 0.0
    %106 = vmatpush2.msra.mxu0 0.0
    %107 = vmatprep.subr.mxu0 0.0
    %108 = vmatpush2.msra.mxu0 0.0
    %109 = vmatprep.subr.mxu0 0.0
    %110 = vmatpush2.msra.mxu0 0.0
    %111 = vmatprep.subr.mxu0 0.0
    %112 = vmatpush2.msra.mxu0 0.0
    %113 = vmatprep.subr.mxu0 0.0
    %114 = vmatpush2.msra.mxu0 0.0
    %115 = vmatprep.subr.mxu0 0.0
    %116 = vmatpush2.msra.mxu0 0.0
    %117 = vmatprep.subr.mxu0 0.0
    %118 = vmatpush2.msra.mxu0 0.0
    %119 = vmatprep.subr.mxu0 0.0
    %120 = vmatpush2.msra.mxu0 0.0
    %121 = vmatprep.mubr.f32.mxu0 0.0
    %122 = vmatmul.mubr.f32.gmra.mxu0 %v51
    %v123 = vpop.f32.mrf.mxu0
    %v124 = vadd.f32 %v34, %v123
    %v125 = vpop.f32.mrf.mxu0
    %126 = vdwg.mxu0
    %v127 = vlaneseq
    %v128 = vshrl.u32 %v127, 7
    %v129 = vsub.s32 0, %v128
    %v130 = vrot.slane %v124, %v129
    %132 = vbcast.lane.b32.xlu0 %v130, 256
    %v133 = vpop.permute.xlu0 %132
    %v134 = vlaneseq
    %v135 = vshrl.u32 %v134, 7
    %v136 = vsub.s32 1, %v135
    %v137 = vrot.slane %v124, %v136
    %139 = vbcast.lane.b32.xlu0 %v137, 256
    %v140 = vpop.permute.xlu0 %139
    %v142 = vsel %vm50, %v20, 0
    %v145 = vsel %vm53, %v18, 0
    %147 = vmatprep.subr.mxu0 0.0
    %148 = vmatpush1.msra.mxu0 0.0
    %149 = vmatprep.subr.mxu0 0.0
    %150 = vmatpush1.msra.mxu0 0.0
    %151 = vmatprep.subr.mxu0 0.0
    %152 = vmatpush1.msra.mxu0 0.0
    %153 = vmatprep.subr.mxu0 0.0
    %154 = vmatpush1.msra.mxu0 0.0
    %155 = vmatprep.subr.mxu0 0.0
    %156 = vmatpush1.msra.mxu0 0.0
    %157 = vmatprep.subr.mxu0 0.0
    %158 = vmatpush1.msra.mxu0 0.0
    %159 = vmatprep.subr.mxu0 0.0
    %160 = vmatpush1.msra.mxu0 0.0
    %161 = vmatprep.subr.mxu0 0.0
    %162 = vmatpush1.msra.mxu0 0.0
    %163 = vmatprep.subr.mxu0 0.0
    %164 = vmatpush1.msra.mxu0 0.0
    %165 = vmatprep.subr.mxu0 0.0
    %166 = vmatpush1.msra.mxu0 0.0
    %167 = vmatprep.subr.mxu0 0.0
    %168 = vmatpush1.msra.mxu0 0.0
    %169 = vmatprep.subr.mxu0 0.0
    %170 = vmatpush1.msra.mxu0 0.0
    %171 = vmatprep.subr.mxu0 0.0
    %172 = vmatpush1.msra.mxu0 0.0
    %173 = vmatprep.subr.mxu0 0.0
    %174 = vmatpush1.msra.mxu0 0.0
    %175 = vmatprep.subr.mxu0 0.0
    %176 = vmatpush1.msra.mxu0 0.0
    %177 = vmatprep.subr.mxu0 0.0
    %178 = vmatpush1.msra.mxu0 %v145
    %179 = vmatprep.subr.mxu0 0.0
    %180 = vmatpush2.msra.mxu0 0.0
    %181 = vmatprep.subr.mxu0 0.0
    %182 = vmatpush2.msra.mxu0 0.0
    %183 = vmatprep.subr.mxu0 0.0
    %184 = vmatpush2.msra.mxu0 0.0
    %185 = vmatprep.subr.mxu0 0.0
    %186 = vmatpush2.msra.mxu0 0.0
    %187 = vmatprep.subr.mxu0 0.0
    %188 = vmatpush2.msra.mxu0 0.0
    %189 = vmatprep.subr.mxu0 0.0
    %190 = vmatpush2.msra.mxu0 0.0
    %191 = vmatprep.subr.mxu0 0.0
    %192 = vmatpush2.msra.mxu0 0.0
    %193 = vmatprep.subr.mxu0 0.0
    %194 = vmatpush2.msra.mxu0 0.0
    %195 = vmatprep.subr.mxu0 0.0
    %196 = vmatpush2.msra.mxu0 0.0
    %197 = vmatprep.subr.mxu0 0.0
    %198 = vmatpush2.msra.mxu0 0.0
    %199 = vmatprep.subr.mxu0 0.0
    %200 = vmatpush2.msra.mxu0 0.0
    %201 = vmatprep.subr.mxu0 0.0
    %202 = vmatpush2.msra.mxu0 0.0
    %203 = vmatprep.subr.mxu0 0.0
    %204 = vmatpush2.msra.mxu0 0.0
    %205 = vmatprep.subr.mxu0 0.0
    %206 = vmatpush2.msra.mxu0 0.0
    %207 = vmatprep.subr.mxu0 0.0
    %208 = vmatpush2.msra.mxu0 0.0
    %209 = vmatprep.subr.mxu0 0.0
    %210 = vmatpush2.msra.mxu0 0.0
    %211 = vmatprep.mubr.f32.mxu0 0.0
    %212 = vmatmul.mubr.f32.gmra.mxu0 %v142
    %v213 = vpop.f32.mrf.mxu0
    %v214 = vadd.f32 %v133, %v213
    %v215 = vpop.f32.mrf.mxu0
    %216 = vdwg.mxu0
    %v218 = vsel %vm53, %v19, 0
    %220 = vmatprep.subr.mxu0 0.0
    %221 = vmatpush1.msra.mxu0 0.0
    %222 = vmatprep.subr.mxu0 0.0
    %223 = vmatpush1.msra.mxu0 0.0
    %224 = vmatprep.subr.mxu0 0.0
    %225 = vmatpush1.msra.mxu0 0.0
    %226 = vmatprep.subr.mxu0 0.0
    %227 = vmatpush1.msra.mxu0 0.0
    %228 = vmatprep.subr.mxu0 0.0
    %229 = vmatpush1.msra.mxu0 0.0
    %230 = vmatprep.subr.mxu0 0.0
    %231 = vmatpush1.msra.mxu0 0.0
    %232 = vmatprep.subr.mxu0 0.0
    %233 = vmatpush1.msra.mxu0 0.0
    %234 = vmatprep.subr.mxu0 0.0
    %235 = vmatpush1.msra.mxu0 0.0
    %236 = vmatprep.subr.mxu0 0.0
    %237 = vmatpush1.msra.mxu0 0.0
    %238 = vmatprep.subr.mxu0 0.0
    %239 = vmatpush1.msra.mxu0 0.0
    %240 = vmatprep.subr.mxu0 0.0
    %241 = vmatpush1.msra.mxu0 0.0
    %242 = vmatprep.subr.mxu0 0.0
    %243 = vmatpush1.msra.mxu0 0.0
    %244 = vmatprep.subr.mxu0 0.0
    %245 = vmatpush1.msra.mxu0 0.0
    %246 = vmatprep.subr.mxu0 0.0
    %247 = vmatpush1.msra.mxu0 0.0
    %248 = vmatprep.subr.mxu0 0.0
    %249 = vmatpush1.msra.mxu0 0.0
    %250 = vmatprep.subr.mxu0 0.0
    %251 = vmatpush1.msra.mxu0 %v218
    %252 = vmatprep.subr.mxu0 0.0
    %253 = vmatpush2.msra.mxu0 0.0
    %254 = vmatprep.subr.mxu0 0.0
    %255 = vmatpush2.msra.mxu0 0.0
    %256 = vmatprep.subr.mxu0 0.0
    %257 = vmatpush2.msra.mxu0 0.0
    %258 = vmatprep.subr.mxu0 0.0
    %259 = vmatpush2.msra.mxu0 0.0
    %260 = vmatprep.subr.mxu0 0.0
    %261 = vmatpush2.msra.mxu0 0.0
    %262 = vmatprep.subr.mxu0 0.0
    %263 = vmatpush2.msra.mxu0 0.0
    %264 = vmatprep.subr.mxu0 0.0
    %265 = vmatpush2.msra.mxu0 0.0
    %266 = vmatprep.subr.mxu0 0.0
    %267 = vmatpush2.msra.mxu0 0.0
    %268 = vmatprep.subr.mxu0 0.0
    %269 = vmatpush2.msra.mxu0 0.0
    %270 = vmatprep.subr.mxu0 0.0
    %271 = vmatpush2.msra.mxu0 0.0
    %272 = vmatprep.subr.mxu0 0.0
    %273 = vmatpush2.msra.mxu0 0.0
    %274 = vmatprep.subr.mxu0 0.0
    %275 = vmatpush2.msra.mxu0 0.0
    %276 = vmatprep.subr.mxu0 0.0
    %277 = vmatpush2.msra.mxu0 0.0
    %278 = vmatprep.subr.mxu0 0.0
    %279 = vmatpush2.msra.mxu0 0.0
    %280 = vmatprep.subr.mxu0 0.0
    %281 = vmatpush2.msra.mxu0 0.0
    %282 = vmatprep.subr.mxu0 0.0
    %283 = vmatpush2.msra.mxu0 0.0
    %284 = vmatprep.mubr.f32.mxu0 0.0
    %285 = vmatmul.mubr.f32.gmra.mxu0 %v142
    %v286 = vpop.f32.mrf.mxu0
    %v287 = vadd.f32 %v140, %v286
    %v288 = vpop.f32.mrf.mxu0
    %289 = vdwg.mxu0
    %vm290 = vcmask 130048
    %291 = vst.msk [vmem:[#allocation2] sm:$0xff] %vm290, %v214
    %292 = vst.msk [vmem:[#allocation2 + $0x8] sm:$0xff] %vm290, %v287
    // Predicated region
    $region18: #{tpu_custom_call.1} parent=1 // pred_check
      _
    $region19: #{tpu_custom_call.1} parent=1 // pred_check_branch
      %294 = sbr.rel (0) target = $region21
    $region20: #{tpu_custom_call.1} parent=1 // pred_region
      %s296 = ssub.s32 256, 256
      %297 = vsyncadd [#allocation3], %s296
      %s298 = sshll.u32 [#allocation2], 4
      %s299 = int_to_ptr.vmem [resolvable:$true] %s298
      %304 = dma.vmem_to_hbm [thread:$0]  %s299, 256, %s4, [#allocation3], 128, 128, 8
    $region21: #{tpu_custom_call.1} parent=1 // pred_fallthru
      _
    // Predicated region
    $region22: #{tpu_custom_call.1} parent=1 // pred_check
      _
    $region23: #{tpu_custom_call.1} parent=1 // pred_check_branch
      %306 = sbr.rel (0) target = $region25
    $region24: #{tpu_custom_call.1} parent=1 // pred_region
      %307 = dma.done [#allocation3], 256
    $region25: #{tpu_custom_call.1} parent=1 // pred_fallthru
      _
    %308 = vsyncpa [#allocation3], 1

</llo_original>
